<compile_context>
chip_gen: v6e
topology: v6e:2x2x1
jax: 0.10.0
libtpu: 0.0.40
codegen_flags: <defaults>
</compile_context>

<pallas_src>
import jax
import jax.numpy as jnp
from jax.experimental import pallas as pl
from jax.experimental.pallas import tpu as pltpu


def _round_up(x, m):
    return ((x + m - 1) // m) * m


def _wd_kernel(x_ref, w_ref, b_ref, o_ref):
    # x_ref: (tm, K) VMEM; w_ref: (R, K) VMEM; b_ref: (1,) SMEM; o_ref: (R, tm) VMEM.
    # (R, K) . (tm, K)^T -> (R, tm): contract over K; result is lane-major so the
    # store is an unmasked, lane-dense vector store.
    h = jax.lax.dot_general(
        w_ref[...], x_ref[...],
        dimension_numbers=(((1,), (1,)), ((), ())),
        preferred_element_type=jnp.float32,
    )
    o_ref[...] = (h + b_ref[0]).astype(o_ref.dtype)


def _vmem_budgets():
    """(vmem_limit_bytes, per_input_buffer_budget) adapted to the chip:
    v7x has 64 MiB physical VMEM -> keep the scoped limit at 32 MiB;
    v5e/v6e have 128 MiB -> allow 64 MiB scoped and ~24 MiB per x buffer."""
    try:
        vmem_cap = int(pltpu.get_tpu_info().vmem_capacity_bytes)
    except Exception:
        vmem_cap = 64 * 1024 * 1024  # conservative fallback
    vmem_limit = min(64 * 1024 * 1024, vmem_cap // 2)
    per_buffer = min(24 * 1024 * 1024, (vmem_limit - 6 * 1024 * 1024) // 2)
    return vmem_limit, per_buffer


def _pick_row_tile(n_rows, k_width, out_rows, itemsize, per_buffer_budget):
    """Largest row tile whose double-buffered (lane-padded x + output) stream
    fits the per-buffer VMEM budget. tm is a multiple of 128 (lane-dense output
    stores); if a single tile covers everything, use tm == n_rows (grid of 1)."""
    lane_k = _round_up(max(k_width, 1), 128)          # VMEM pads the lane dim
    bytes_per_row = lane_k * itemsize + out_rows * itemsize
    tm = per_buffer_budget // bytes_per_row
    tm = max(128, (tm // 128) * 128)
    if tm >= n_rows:
        tm = n_rows                                   # single step, block == array
    return tm


def wd_approximator(x, weight, bias):
    """x: [N, nfeat]; weight: [1, nfeat] / [nfeat, 1] / [nfeat];
    bias: scalar / [1] / [1, 1]. Returns [N, 1] (matches nn.Linear(nfeat, 1))."""
    N, nfeat = x.shape
    dtype = x.dtype
    itemsize = jnp.dtype(dtype).itemsize

    w_row = jnp.asarray(weight, dtype=dtype).reshape(1, nfeat)   # lane-major weight
    b = jnp.asarray(bias, jnp.float32).reshape(1)                # SMEM scalar

    # Lane-packing for small nfeat: fold `pack` consecutive samples into one
    # 128-wide row (free reshape of contiguous data) and use a block-diagonal
    # (pack, 128) weight so each packed row yields `pack` outputs.
    pack = 128 // nfeat if (nfeat < 128 and 128 % nfeat == 0) else 1
    if pack > 1 and N % pack == 0:
        x_k = x.reshape(N // pack, pack * nfeat)                  # (N/pack, 128)
        w_k = jnp.kron(jnp.eye(pack, dtype=dtype), w_row)         # (pack, 128)
        out_rows = pack
    else:
        pack = 1
        x_k = x
        w_k = w_row
        out_rows = 1

    n_rows, k_width = x_k.shape

    vmem_limit, per_buffer_budget = _vmem_budgets()
    tm = _pick_row_tile(n_rows, k_width, out_rows, itemsize, per_buffer_budget)

    grid_n = pl.cdiv(n_rows, tm)     # ragged last x block handled by Pallas (no jnp.pad)
    out_cols = grid_n * tm           # only the (tiny) output slab is padded to tiles

    out = pl.pallas_call(
        _wd_kernel,
        out_shape=jax.ShapeDtypeStruct((out_rows, out_cols), dtype),
        grid_spec=pltpu.PrefetchScalarGridSpec(
            num_scalar_prefetch=0,
            grid=(grid_n,),
            in_specs=[
                pl.BlockSpec((tm, k_width), lambda i: (i, 0)),        # x row tile
                pl.BlockSpec((out_rows, k_width), lambda i: (0, 0)),  # weight
                pl.BlockSpec(memory_space=pltpu.MemorySpace.SMEM),    # bias scalar
            ],
            out_specs=pl.BlockSpec((out_rows, tm), lambda i: (0, i)), # lane-dense
        ),
        compiler_params=pltpu.CompilerParams(
            dimension_semantics=("parallel",),   # v7x: shard grid across both TCs
            vmem_limit_bytes=vmem_limit,
        ),
        cost_estimate=pl.CostEstimate(
            flops=2 * N * nfeat,
            transcendentals=0,
            bytes_accessed=N * nfeat * itemsize            # x read
            + N * itemsize                                  # h write
            + out_rows * k_width * itemsize,                # weight read
        ),
    )(x_k, w_k, b)

    h = out[:, :n_rows]              # drop padded tile columns (garbage from ragged block)
    if pack > 1:
        # (pack, N/pack) -> (N/pack, pack) -> (N, 1); restores original row order.
        return h.T.reshape(N, 1)
    return h.reshape(N, 1)


if __name__ == "__main__":
    key = jax.random.PRNGKey(0)
    kx, kw, kb, kx2 = jax.random.split(key, 4)

    # Case 1: packed path (nfeat=32 -> 4 samples per 128-lane row).
    N, nfeat = 8, 32
    x = jax.random.normal(kx, (N, nfeat), dtype=jnp.float32)
    bound = 1.0 / (nfeat ** 0.5)
    weight = jax.random.uniform(kw, (1, nfeat), dtype=jnp.float32,
                                minval=-bound, maxval=bound)
    bias = jax.random.uniform(kb, (1,), dtype=jnp.float32,
                              minval=-bound, maxval=bound)

    out = jax.block_until_ready(wd_approximator(x, weight, bias))
    ref = x @ weight.T + bias
    assert out.shape == (N, 1)
    assert jnp.allclose(out, ref, atol=1e-4, rtol=1e-4)

    # Case 2: unpacked fallback (nfeat does not divide 128), ragged row count.
    N2, nfeat2 = 10, 48
    x2 = jax.random.normal(kx2, (N2, nfeat2), dtype=jnp.float32)
    w2 = weight[:, :1] * jnp.ones((1, nfeat2), jnp.float32) * 0.03
    out2 = jax.block_until_ready(wd_approximator(x2, w2, bias))
    ref2 = x2 @ w2.T + bias
    assert out2.shape == (N2, 1)
    assert jnp.allclose(out2, ref2, atol=1e-4, rtol=1e-4)

    print("KERNEL_OK")
</pallas_src>

<mosaic_0001>
module attributes {stable_mosaic.version = 11 : i64} {
  func.func @_wd_kernel(%arg0: i32, %arg1: memref<2x128xf32, #tpu.memory_space<vmem>>, %arg2: memref<4x128xf32, #tpu.memory_space<vmem>>, %arg3: memref<1xf32, #tpu.memory_space<smem>>, %arg4: memref<4x2xf32, #tpu.memory_space<vmem>>) attributes {dimension_semantics = [#tpu.dimension_semantics<parallel>], iteration_bounds = array<i64: 1>, scalar_prefetch = 0 : i64, scratch_operands = 0 : i64, tpu.core_type = #tpu.core_type<tc>, window_params = [{transform_indices = @transform_0, window_bounds = array<i64: 2, 128>}, {pipeline_mode = #tpu.pipeline_mode<synchronous>, transform_indices = @transform_1, window_bounds = array<i64: 4, 128>}, {transform_indices = @transform_2, window_bounds = array<i64: 1>}, {transform_indices = @transform_3, window_bounds = array<i64: 4, 2>}]} {
    %c0 = arith.constant 0 : index
    %c0_0 = arith.constant 0 : index
    %0 = vector.load %arg2[%c0, %c0_0] : memref<4x128xf32, #tpu.memory_space<vmem>>, vector<4x128xf32>
    %c0_1 = arith.constant 0 : index
    %c0_2 = arith.constant 0 : index
    %1 = vector.load %arg1[%c0_1, %c0_2] : memref<2x128xf32, #tpu.memory_space<vmem>>, vector<2x128xf32>
    %cst = arith.constant dense<0.000000e+00> : vector<4x2xf32>
    %2 = tpu.matmul %0, %1, %cst {dimension_numbers = #tpu.dot_dimension_numbers<[1], [1], [0], [0], [0, 0, 1, 0], [], []>} : vector<4x128xf32>, vector<2x128xf32>, vector<4x2xf32> -> vector<4x2xf32>
    %c0_3 = arith.constant 0 : index
    %3 = memref.load %arg3[%c0_3] : memref<1xf32, #tpu.memory_space<smem>>
    %4 = vector.broadcast %3 : f32 to vector<4x2xf32>
    %5 = arith.addf %2, %4 : vector<4x2xf32>
    %c0_4 = arith.constant 0 : index
    %c0_5 = arith.constant 0 : index
    %6 = vector.load %arg4[%c0_4, %c0_5] : memref<4x2xf32, #tpu.memory_space<vmem>>, vector<4x2xf32>
    tpu.vector_store %arg4[%c0_4, %c0_5], %5 {strides = array<i32>} : memref<4x2xf32, #tpu.memory_space<vmem>>, vector<4x2xf32>,
    return
  }
  func.func @transform_0(%arg0: i32) -> (i32, i32) {
    %c0_i32 = arith.constant 0 : i32
    %c0_i32_0 = arith.constant 0 : i32
    return %arg0, %c0_i32 : i32, i32
  }
  func.func @transform_1(%arg0: i32) -> (i32, i32) {
    %c0_i32 = arith.constant 0 : i32
    %c0_i32_0 = arith.constant 0 : i32
    %c0_i32_1 = arith.constant 0 : i32
    return %c0_i32, %c0_i32_0 : i32, i32
  }
  func.func @transform_2(%arg0: i32) -> i32 {
    %c0_i32 = arith.constant 0 : i32
    %c0_i32_0 = arith.constant 0 : i32
    return %c0_i32 : i32
  }
  func.func @transform_3(%arg0: i32) -> (i32, i32) {
    %c0_i32 = arith.constant 0 : i32
    %c0_i32_0 = arith.constant 0 : i32
    return %c0_i32, %arg0 : i32, i32
  }
}

</mosaic_0001>

<llo_original>
// kernel: tpu_custom_call.1
$region0: #{tpu_custom_call.1}
  #allocation0 [shape = 'u32[]', space=smem, size = 0x4, offset = 0x4, fixed_abs, tag = 'smem constant byte address 0x4 - core index']
  #allocation1 [shape = 'u32[144,128]{1,0:T(1,128)}', space=vmem, size = 0x12000, scoped, tag = 'internal scratch']
  #allocation2 [shape = 'f32[1]{0:T(128)S(6)}', space=smem, size = 0x200, scoped, tag = 'scoped memory for tpu_custom_call.1']
  %s0 = inlined_call_operand.vmem [shape: f32[2,128], index: 0, kind: input, shape index: {}]
  %s1 = inlined_call_operand.hbm [shape: f32[4,128], index: 1, kind: input, shape index: {}]
  %s2 = inlined_call_operand.<no memory space> [shape: f32[1], index: 2, kind: input, shape index: {}]
  %s3 = inlined_call_operand.vmem [shape: f32[4,2], index: 3, kind: output, shape index: {}]
  %s4 = sld [smem:[#allocation0]]
  $region26: #{tpu_custom_call.1} parent=0
    _
  %s6 = ssub.s32 1, %s4
  %s7 = scalar_select 0, %s6, %s4
  %8 = sst [smem:[#allocation2]] %s2
  $region1: #{tpu_custom_call.1} parent=0
    #allocation3 [shape = 'u8[2048]{0}', space=vmem, size = 0x800, scoped, tag = 'input window, operand 1, single buffered']
    #allocation4 [shape = 's32[1]{0}', space=sflag, size = 0x4, scoped, tag = 'scoped memory for tpu_custom_call.1']
    %9 = vsyncpa [#allocation4], 0
    // Predicated region
    $region2: #{tpu_custom_call.1} parent=1 // pred_check
      _
    $region3: #{tpu_custom_call.1} parent=1 // pred_check_branch
      %11 = sbr.rel (0) target = $region5
    $region4: #{tpu_custom_call.1} parent=1 // pred_region
      _
    $region5: #{tpu_custom_call.1} parent=1 // pred_fallthru
      _
    // Predicated region
    $region6: #{tpu_custom_call.1} parent=1 // pred_check
      _
    $region7: #{tpu_custom_call.1} parent=1 // pred_check_branch
      %13 = sbr.rel (0) target = $region9
    $region8: #{tpu_custom_call.1} parent=1 // pred_region
      %s15 = ssub.s32 64, 64
      %16 = vsyncadd [#allocation4], %s15
      %s18 = sshll.u32 [#allocation3], 4
      %s19 = int_to_ptr.vmem [resolvable:$true] %s18
      %21 = dma.hbm_to_vmem [thread:$0]  %s1, 64, %s19, [#allocation4]
    $region9: #{tpu_custom_call.1} parent=1 // pred_fallthru
      _
    // Predicated region
    $region10: #{tpu_custom_call.1} parent=1 // pred_check
      _
    $region11: #{tpu_custom_call.1} parent=1 // pred_check_branch
      %23 = sbr.rel (0) target = $region13
    $region12: #{tpu_custom_call.1} parent=1 // pred_region
      _
    $region13: #{tpu_custom_call.1} parent=1 // pred_fallthru
      _
    // Predicated region
    $region14: #{tpu_custom_call.1} parent=1 // pred_check
      _
    $region15: #{tpu_custom_call.1} parent=1 // pred_check_branch
      %25 = sbr.rel (0) target = $region17
    $region16: #{tpu_custom_call.1} parent=1 // pred_region
      %26 = dma.done [#allocation4], 64
    $region17: #{tpu_custom_call.1} parent=1 // pred_fallthru
      _
    %v27 = vld [vmem:[#allocation3] sm:$0xf]
    %v28 = vld [vmem:[%s0] sm:$0x3]
    %s29 = sld [smem:[#allocation2]]
    %v30 = vstv %s29
    %31 = vmatprep.subr.mxu0 0.0
    %32 = vmatpush1.xpose.msra.mxu0 0.0
    %33 = vmatprep.subr.mxu0 0.0
    %34 = vmatpush1.xpose.msra.mxu0 0.0
    %35 = vmatprep.subr.mxu0 0.0
    %36 = vmatpush1.xpose.msra.mxu0 0.0
    %37 = vmatprep.subr.mxu0 0.0
    %38 = vmatpush1.xpose.msra.mxu0 0.0
    %39 = vmatprep.subr.mxu0 0.0
    %40 = vmatpush1.xpose.msra.mxu0 0.0
    %41 = vmatprep.subr.mxu0 0.0
    %42 = vmatpush1.xpose.msra.mxu0 0.0
    %43 = vmatprep.subr.mxu0 0.0
    %44 = vmatpush1.xpose.msra.mxu0 0.0
    %45 = vmatprep.subr.mxu0 0.0
    %46 = vmatpush1.xpose.msra.mxu0 0.0
    %47 = vmatprep.subr.mxu0 0.0
    %48 = vmatpush1.xpose.msra.mxu0 0.0
    %49 = vmatprep.subr.mxu0 0.0
    %50 = vmatpush1.xpose.msra.mxu0 0.0
    %51 = vmatprep.subr.mxu0 0.0
    %52 = vmatpush1.xpose.msra.mxu0 0.0
    %53 = vmatprep.subr.mxu0 0.0
    %54 = vmatpush1.xpose.msra.mxu0 0.0
    %55 = vmatprep.subr.mxu0 0.0
    %56 = vmatpush1.xpose.msra.mxu0 0.0
    %57 = vmatprep.subr.mxu0 0.0
    %58 = vmatpush1.xpose.msra.mxu0 0.0
    %59 = vmatprep.subr.mxu0 0.0
    %60 = vmatpush1.xpose.msra.mxu0 0.0
    %61 = vmatprep.subr.mxu0 0.0
    %62 = vmatpush1.xpose.msra.mxu0 %v28
    %63 = vmatprep.subr.mxu0 0.0
    %64 = vmatpush2.xpose.msra.mxu0 0.0
    %65 = vmatprep.subr.mxu0 0.0
    %66 = vmatpush2.xpose.msra.mxu0 0.0
    %67 = vmatprep.subr.mxu0 0.0
    %68 = vmatpush2.xpose.msra.mxu0 0.0
    %69 = vmatprep.subr.mxu0 0.0
    %70 = vmatpush2.xpose.msra.mxu0 0.0
    %71 = vmatprep.subr.mxu0 0.0
    %72 = vmatpush2.xpose.msra.mxu0 0.0
    %73 = vmatprep.subr.mxu0 0.0
    %74 = vmatpush2.xpose.msra.mxu0 0.0
    %75 = vmatprep.subr.mxu0 0.0
    %76 = vmatpush2.xpose.msra.mxu0 0.0
    %77 = vmatprep.subr.mxu0 0.0
    %78 = vmatpush2.xpose.msra.mxu0 0.0
    %79 = vmatprep.subr.mxu0 0.0
    %80 = vmatpush2.xpose.msra.mxu0 0.0
    %81 = vmatprep.subr.mxu0 0.0
    %82 = vmatpush2.xpose.msra.mxu0 0.0
    %83 = vmatprep.subr.mxu0 0.0
    %84 = vmatpush2.xpose.msra.mxu0 0.0
    %85 = vmatprep.subr.mxu0 0.0
    %86 = vmatpush2.xpose.msra.mxu0 0.0
    %87 = vmatprep.subr.mxu0 0.0
    %88 = vmatpush2.xpose.msra.mxu0 0.0
    %89 = vmatprep.subr.mxu0 0.0
    %90 = vmatpush2.xpose.msra.mxu0 0.0
    %91 = vmatprep.subr.mxu0 0.0
    %92 = vmatpush2.xpose.msra.mxu0 0.0
    %93 = vmatprep.subr.mxu0 0.0
    %94 = vmatpush2.xpose.msra.mxu0 0.0
    %95 = vmatprep.mubr.f32.mxu0 0.0
    %96 = vmatmul.mubr.f32.gmra.mxu0 %v27
    %v97 = vpop.f32.mrf.mxu0
    %v98 = vadd.f32 %v30, %v97
    %v99 = vpop.f32.mrf.mxu0
    %100 = vdwg.mxu0
    %vm101 = vcmask 11264
    %102 = vst.msk [vmem:[%s3] sm:$0xf] %vm101, %v98
    // Predicated region
    $region18: #{tpu_custom_call.1} parent=1 // pred_check
      _
    $region19: #{tpu_custom_call.1} parent=1 // pred_check_branch
      %104 = sbr.rel (0) target = $region21
    $region20: #{tpu_custom_call.1} parent=1 // pred_region
      _
    $region21: #{tpu_custom_call.1} parent=1 // pred_fallthru
      _
    // Predicated region
    $region22: #{tpu_custom_call.1} parent=1 // pred_check
      _
    $region23: #{tpu_custom_call.1} parent=1 // pred_check_branch
      %106 = sbr.rel (0) target = $region25
    $region24: #{tpu_custom_call.1} parent=1 // pred_region
      _
    $region25: #{tpu_custom_call.1} parent=1 // pred_fallthru
      _
    %107 = vsyncpa [#allocation4], 1

</llo_original>
